<compile_context>
chip_gen: v7x
topology: tpu7x:2x2x1
jax: 0.10.0
libtpu: 0.0.40
codegen_flags: <defaults>
</compile_context>

<pallas_src>
import functools

import numpy as np
import jax
import jax.numpy as jnp
from jax import lax
from jax.experimental import pallas as pl
from jax.experimental.pallas import tpu as pltpu

H = 0.5          # self.h
EPS = 1e-8       # self.eps
LN_EPS = 1e-5    # nn.LayerNorm default eps


def _fused_kernel(x_ref, cab_ref, cc_ref, wre_ref, tile_ref, grp_ref,
                  wfrs_ref, wsum_ref, beff_ref, out_ref, *, inv_f):
    xt = x_ref[...]                                            # [D, bn] lane-dense
    sq = xt * xt                                               # [D, bn]

    # ---- firing logits: expanded quadratic, single stacked-LHS MXU matmul ----
    big = jnp.concatenate([sq, xt], axis=0)                    # [2D, bn] (sublane stack)
    logits = jnp.dot(cab_ref[...], big,
                     preferred_element_type=jnp.float32) + cc_ref[...]   # [R, bn]

    # ---- softmax over rules (sublane axis, R=8) ----
    m = jnp.max(logits, axis=0, keepdims=True)                 # [1, bn]
    e = jnp.exp(logits - m)
    frs = e / jnp.sum(e, axis=0, keepdims=True)                # [R, bn]

    # ---- consequent contraction, reassociated (Z / Xp never materialized) ----
    # y[o*R+r, n] = sum_d x[n,d] * (W*gamma)[o, r*D+d]
    y = jnp.dot(wre_ref[...], xt, preferred_element_type=jnp.float32)        # [O*R, bn]
    frs_rep = jnp.dot(tile_ref[...], frs, preferred_element_type=jnp.float32)  # [O*R, bn]
    acc = jnp.dot(grp_ref[...], y * frs_rep,
                  preferred_element_type=jnp.float32)                        # [O, bn]
    acc = acc + jnp.dot(wfrs_ref[...], frs,
                        preferred_element_type=jnp.float32)                  # [O, bn]

    # ---- LayerNorm stats via softmax-sums-to-one identity ----
    sx = jnp.sum(xt, axis=0, keepdims=True)                    # [1, bn]
    s2x = jnp.sum(sq, axis=0, keepdims=True)                   # [1, bn]
    s2f = jnp.sum(frs * frs, axis=0, keepdims=True)            # [1, bn]
    mu = (sx + 1.0) * inv_f                                    # mean of Z row
    var = s2f * (s2x + 1.0) * inv_f - mu * mu                  # var of Z row
    inv_std = lax.rsqrt(var + LN_EPS)                          # [1, bn]

    # mean-centering folded into bias: out = (Z@Wg^T - mu*rowsum(Wg))*inv_std + b_eff
    out_ref[...] = (acc - mu * wsum_ref[...]) * inv_std + beff_ref[...]


def _round_up(v, m):
    return -(-v // m) * m


def pre_htsk_forward(x, centers, sigmas, ln_gamma, ln_beta, cons_w, cons_b,
                     *, block_n=256):
    n, d = x.shape
    r = centers.shape[1]
    o = cons_w.shape[0]
    rd = r * d
    f = rd + r

    # --- one-time precomputation of grid-invariant constants (wrapper side) ---
    coef = H / (sigmas * sigmas) + EPS                               # [D, R]
    coef_a = -coef / d                                               # acts on x^2
    coef_b = 2.0 * centers * coef / d                                # acts on x
    cab_t = jnp.concatenate([coef_a.T, coef_b.T], axis=1)            # [R, 2D]
    cc_t = (-jnp.sum(centers * centers * coef, axis=0) / d)[:, None]  # [R, 1]

    wg = cons_w * ln_gamma[None, :]                                  # gamma folded into W
    wre_t = wg[:, :rd].reshape(o * r, d)                             # [O*R, D]
    wg_frs = wg[:, rd:]                                              # [O, R]
    tile_t = jnp.tile(jnp.eye(r, dtype=jnp.float32), (o, 1))         # [O*R, R]
    grp_t = jnp.kron(jnp.eye(o, dtype=jnp.float32),
                     jnp.ones((1, r), dtype=jnp.float32))            # [O, O*R]
    wsum_t = jnp.sum(wg, axis=1, keepdims=True)                      # [O, 1] rowsum(W*gamma)
    beff_t = (cons_b + cons_w @ ln_beta)[:, None]                    # [O, 1] beta folded into bias

    # --- batch tiling: lane dim must be a multiple of 128; keep >= 2 grid
    #     steps when the batch allows it (v7x has 2 TensorCores) ---
    bn = _round_up(max(1, min(int(block_n), n)), 128)
    if n > 128 and bn * 2 > _round_up(n, 128):
        bn = max(128, _round_up(_round_up(n, 128) // 2, 128))
    n_pad = _round_up(n, bn)

    x_t = x.T                                                        # [D, N] lane-dense
    if n_pad != n:
        x_t = jnp.pad(x_t, ((0, 0), (0, n_pad - n)))

    cost = pl.CostEstimate(
        flops=2 * n_pad * (r * 2 * d + o * r * d + o * r * r + o * o * r + o * r),
        transcendentals=(r + 1) * n_pad,
        bytes_accessed=4 * (n_pad * (d + o)
                            + r * 2 * d + r + o * r * d + o * r * r
                            + o * o * r + o * r + 2 * o),
    )

    def inv_spec(shape):
        return pl.BlockSpec(shape, lambda i: (0, 0))

    out_t = pl.pallas_call(
        functools.partial(_fused_kernel, inv_f=1.0 / f),
        out_shape=jax.ShapeDtypeStruct((o, n_pad), jnp.float32),
        grid=(n_pad // bn,),
        in_specs=[pl.BlockSpec((d, bn), lambda i: (0, i)),   # x^T batch block
                  inv_spec((r, 2 * d)),                      # [coef_a; coef_b]^T
                  inv_spec((r, 1)),                          # coef_c
                  inv_spec((o * r, d)),                      # reassociated W*gamma (xp part)
                  inv_spec((o * r, r)),                      # frs tile selector
                  inv_spec((o, o * r)),                      # group-sum selector
                  inv_spec((o, r)),                          # W*gamma (frs part)
                  inv_spec((o, 1)),                          # rowsum(W*gamma)
                  inv_spec((o, 1))],                         # effective bias
        out_specs=pl.BlockSpec((o, bn), lambda i: (0, i)),   # lane-dense output
        compiler_params=pltpu.CompilerParams(
            dimension_semantics=("parallel",)),
        cost_estimate=cost,
    )(x_t, cab_t, cc_t, wre_t, tile_t, grp_t, wg_frs, wsum_t, beff_t)

    return out_t[:, :n].T                                            # [N, O]


def pre_htsk_reference(x, centers, sigmas, ln_gamma, ln_beta, cons_w, cons_b):
    coef = H / sigmas ** 2 + EPS
    logits = jnp.mean(-(x[:, :, None] - centers[None]) ** 2 * coef[None], axis=1)
    frs = jax.nn.softmax(logits, axis=1)
    xp = frs[:, :, None] * x[:, None, :]
    z = jnp.concatenate([xp.reshape(x.shape[0], -1), frs], axis=1)
    mu = jnp.mean(z, axis=1, keepdims=True)
    var = jnp.mean((z - mu) ** 2, axis=1, keepdims=True)
    zo = (z - mu) / jnp.sqrt(var + LN_EPS) * ln_gamma + ln_beta
    return zo @ cons_w.T + cons_b


if __name__ == "__main__":
    # Shapes consistent with the module: in_dim=16, n_rules=8, out_dim=4,
    # order=1  ->  feature width (in_dim+1)*n_rules = 136.  batch=512 with
    # block_n=256 gives a 2-step parallel grid (both v7x TensorCores busy).
    N, D, R, O = 512, 16, 8, 4
    F = (D + 1) * R
    sigma_scale = 1.0

    key = jax.random.PRNGKey(0)
    kx, kc, kw, kb = jax.random.split(key, 4)

    x = jax.random.normal(kx, (N, D), dtype=jnp.float32)

    # Deterministic parameter init mirroring build_model():
    centers = jax.random.normal(kc, (D, R), dtype=jnp.float32)   # normal(0, 1)
    sigmas = jnp.ones((D, R), dtype=jnp.float32) * sigma_scale   # const sigma_scale
    ln_gamma = jnp.ones((F,), dtype=jnp.float32)                 # LayerNorm affine
    ln_beta = jnp.zeros((F,), dtype=jnp.float32)
    bound = 1.0 / np.sqrt(F)                                     # nn.Linear default
    cons_w = jax.random.uniform(kw, (O, F), minval=-bound, maxval=bound,
                                dtype=jnp.float32)
    cons_b = jax.random.uniform(kb, (O,), minval=-bound, maxval=bound,
                                dtype=jnp.float32)

    fwd = jax.jit(pre_htsk_forward)
    out = fwd(x, centers, sigmas, ln_gamma, ln_beta, cons_w, cons_b)
    out = jax.block_until_ready(out)

    ref = pre_htsk_reference(x, centers, sigmas, ln_gamma, ln_beta, cons_w, cons_b)
    # Expanded-quadratic distance + reassociated LayerNorm/consequent introduce
    # small f32 drift vs the direct reference formulation.
    np.testing.assert_allclose(np.asarray(out), np.asarray(ref),
                               rtol=2e-4, atol=2e-4)
    print("KERNEL_OK")
</pallas_src>

<mosaic_0001>
module attributes {stable_mosaic.version = 11 : i64} {
  func.func @_fused_kernel(%arg0: i32, %arg1: memref<16x256xf32, #tpu.memory_space<vmem>>, %arg2: memref<8x32xf32, #tpu.memory_space<vmem>>, %arg3: memref<8x1xf32, #tpu.memory_space<vmem>>, %arg4: memref<32x16xf32, #tpu.memory_space<vmem>>, %arg5: memref<32x8xf32, #tpu.memory_space<vmem>>, %arg6: memref<4x32xf32, #tpu.memory_space<vmem>>, %arg7: memref<4x8xf32, #tpu.memory_space<vmem>>, %arg8: memref<4x1xf32, #tpu.memory_space<vmem>>, %arg9: memref<4x1xf32, #tpu.memory_space<vmem>>, %arg10: memref<4x256xf32, #tpu.memory_space<vmem>>) attributes {dimension_semantics = [#tpu.dimension_semantics<parallel>], iteration_bounds = array<i64: 2>, scalar_prefetch = 0 : i64, scratch_operands = 0 : i64, tpu.core_type = #tpu.core_type<tc>, window_params = [{transform_indices = @transform_0, window_bounds = array<i64: 16, 256>}, {pipeline_mode = #tpu.pipeline_mode<synchronous>, transform_indices = @transform_1, window_bounds = array<i64: 8, 32>}, {pipeline_mode = #tpu.pipeline_mode<synchronous>, transform_indices = @transform_2, window_bounds = array<i64: 8, 1>}, {pipeline_mode = #tpu.pipeline_mode<synchronous>, transform_indices = @transform_3, window_bounds = array<i64: 32, 16>}, {pipeline_mode = #tpu.pipeline_mode<synchronous>, transform_indices = @transform_4, window_bounds = array<i64: 32, 8>}, {pipeline_mode = #tpu.pipeline_mode<synchronous>, transform_indices = @transform_5, window_bounds = array<i64: 4, 32>}, {pipeline_mode = #tpu.pipeline_mode<synchronous>, transform_indices = @transform_6, window_bounds = array<i64: 4, 8>}, {pipeline_mode = #tpu.pipeline_mode<synchronous>, transform_indices = @transform_7, window_bounds = array<i64: 4, 1>}, {pipeline_mode = #tpu.pipeline_mode<synchronous>, transform_indices = @transform_8, window_bounds = array<i64: 4, 1>}, {transform_indices = @transform_9, window_bounds = array<i64: 4, 256>}]} {
    %c0 = arith.constant 0 : index
    %c0_0 = arith.constant 0 : index
    %0 = vector.load %arg1[%c0, %c0_0] : memref<16x256xf32, #tpu.memory_space<vmem>>, vector<16x256xf32>
    %1 = arith.mulf %0, %0 : vector<16x256xf32>
    %2 = tpu.concatenate %1, %0 in 0 : vector<16x256xf32>, vector<16x256xf32> -> vector<32x256xf32>
    %c0_1 = arith.constant 0 : index
    %c0_2 = arith.constant 0 : index
    %3 = vector.load %arg2[%c0_1, %c0_2] : memref<8x32xf32, #tpu.memory_space<vmem>>, vector<8x32xf32>
    %cst = arith.constant dense<0.000000e+00> : vector<8x256xf32>
    %4 = tpu.matmul %3, %2, %cst {dimension_numbers = #tpu.dot_dimension_numbers<[1], [0], [0], [1], [0, 0, 1, 1], [], []>} : vector<8x32xf32>, vector<32x256xf32>, vector<8x256xf32> -> vector<8x256xf32>
    %c0_3 = arith.constant 0 : index
    %c0_4 = arith.constant 0 : index
    %5 = vector.load %arg3[%c0_3, %c0_4] : memref<8x1xf32, #tpu.memory_space<vmem>>, vector<8x1xf32>
    %6 = vector.broadcast %5 : vector<8x1xf32> to vector<8x256xf32>
    %7 = arith.addf %4, %6 : vector<8x256xf32>
    %cst_5 = arith.constant dense<0xFF800000> : vector<256xf32>
    %8 = vector.multi_reduction <maximumf>, %7, %cst_5 [0] : vector<8x256xf32> to vector<256xf32>
    %9 = vector.shape_cast %8 : vector<256xf32> to vector<1x256xf32>
    %10 = vector.broadcast %9 : vector<1x256xf32> to vector<8x256xf32>
    %11 = arith.subf %7, %10 : vector<8x256xf32>
    %12 = math.exp %11 : vector<8x256xf32>
    %cst_6 = arith.constant dense<0.000000e+00> : vector<256xf32>
    %13 = vector.multi_reduction <add>, %12, %cst_6 [0] : vector<8x256xf32> to vector<256xf32>
    %14 = vector.shape_cast %13 : vector<256xf32> to vector<1x256xf32>
    %15 = vector.broadcast %14 : vector<1x256xf32> to vector<8x256xf32>
    %16 = arith.divf %12, %15 : vector<8x256xf32>
    %c0_7 = arith.constant 0 : index
    %c0_8 = arith.constant 0 : index
    %17 = vector.load %arg4[%c0_7, %c0_8] : memref<32x16xf32, #tpu.memory_space<vmem>>, vector<32x16xf32>
    %cst_9 = arith.constant dense<0.000000e+00> : vector<32x256xf32>
    %18 = tpu.matmul %17, %0, %cst_9 {dimension_numbers = #tpu.dot_dimension_numbers<[1], [0], [0], [1], [0, 0, 1, 1], [], []>} : vector<32x16xf32>, vector<16x256xf32>, vector<32x256xf32> -> vector<32x256xf32>
    %c0_10 = arith.constant 0 : index
    %c0_11 = arith.constant 0 : index
    %19 = vector.load %arg5[%c0_10, %c0_11] : memref<32x8xf32, #tpu.memory_space<vmem>>, vector<32x8xf32>
    %cst_12 = arith.constant dense<0.000000e+00> : vector<32x256xf32>
    %20 = tpu.matmul %19, %16, %cst_12 {dimension_numbers = #tpu.dot_dimension_numbers<[1], [0], [0], [1], [0, 0, 1, 1], [], []>} : vector<32x8xf32>, vector<8x256xf32>, vector<32x256xf32> -> vector<32x256xf32>
    %c0_13 = arith.constant 0 : index
    %c0_14 = arith.constant 0 : index
    %21 = vector.load %arg6[%c0_13, %c0_14] : memref<4x32xf32, #tpu.memory_space<vmem>>, vector<4x32xf32>
    %22 = arith.mulf %18, %20 : vector<32x256xf32>
    %cst_15 = arith.constant dense<0.000000e+00> : vector<4x256xf32>
    %23 = tpu.matmul %21, %22, %cst_15 {dimension_numbers = #tpu.dot_dimension_numbers<[1], [0], [0], [1], [0, 0, 1, 1], [], []>} : vector<4x32xf32>, vector<32x256xf32>, vector<4x256xf32> -> vector<4x256xf32>
    %c0_16 = arith.constant 0 : index
    %c0_17 = arith.constant 0 : index
    %24 = vector.load %arg7[%c0_16, %c0_17] : memref<4x8xf32, #tpu.memory_space<vmem>>, vector<4x8xf32>
    %cst_18 = arith.constant dense<0.000000e+00> : vector<4x256xf32>
    %25 = tpu.matmul %24, %16, %cst_18 {dimension_numbers = #tpu.dot_dimension_numbers<[1], [0], [0], [1], [0, 0, 1, 1], [], []>} : vector<4x8xf32>, vector<8x256xf32>, vector<4x256xf32> -> vector<4x256xf32>
    %26 = arith.addf %23, %25 : vector<4x256xf32>
    %cst_19 = arith.constant dense<0.000000e+00> : vector<256xf32>
    %27 = vector.multi_reduction <add>, %0, %cst_19 [0] : vector<16x256xf32> to vector<256xf32>
    %28 = vector.shape_cast %27 : vector<256xf32> to vector<1x256xf32>
    %cst_20 = arith.constant dense<0.000000e+00> : vector<256xf32>
    %29 = vector.multi_reduction <add>, %1, %cst_20 [0] : vector<16x256xf32> to vector<256xf32>
    %30 = vector.shape_cast %29 : vector<256xf32> to vector<1x256xf32>
    %31 = arith.mulf %16, %16 : vector<8x256xf32>
    %cst_21 = arith.constant dense<0.000000e+00> : vector<256xf32>
    %32 = vector.multi_reduction <add>, %31, %cst_21 [0] : vector<8x256xf32> to vector<256xf32>
    %33 = vector.shape_cast %32 : vector<256xf32> to vector<1x256xf32>
    %cst_22 = arith.constant 1.000000e+00 : f32
    %34 = vector.broadcast %cst_22 : f32 to vector<1x256xf32>
    %35 = arith.addf %28, %34 : vector<1x256xf32>
    %cst_23 = arith.constant 0.0073529412 : f32
    %36 = vector.broadcast %cst_23 : f32 to vector<1x256xf32>
    %37 = arith.mulf %35, %36 : vector<1x256xf32>
    %cst_24 = arith.constant 1.000000e+00 : f32
    %38 = vector.broadcast %cst_24 : f32 to vector<1x256xf32>
    %39 = arith.addf %30, %38 : vector<1x256xf32>
    %40 = arith.mulf %33, %39 : vector<1x256xf32>
    %cst_25 = arith.constant 0.0073529412 : f32
    %41 = vector.broadcast %cst_25 : f32 to vector<1x256xf32>
    %42 = arith.mulf %40, %41 : vector<1x256xf32>
    %43 = arith.mulf %37, %37 : vector<1x256xf32>
    %44 = arith.subf %42, %43 : vector<1x256xf32>
    %cst_26 = arith.constant 9.99999974E-6 : f32
    %45 = vector.broadcast %cst_26 : f32 to vector<1x256xf32>
    %46 = arith.addf %44, %45 : vector<1x256xf32>
    %47 = math.rsqrt %46 : vector<1x256xf32>
    %c0_27 = arith.constant 0 : index
    %c0_28 = arith.constant 0 : index
    %48 = vector.load %arg8[%c0_27, %c0_28] : memref<4x1xf32, #tpu.memory_space<vmem>>, vector<4x1xf32>
    %49 = vector.broadcast %37 : vector<1x256xf32> to vector<4x256xf32>
    %50 = vector.broadcast %48 : vector<4x1xf32> to vector<4x256xf32>
    %51 = arith.mulf %49, %50 : vector<4x256xf32>
    %52 = arith.subf %26, %51 : vector<4x256xf32>
    %53 = vector.broadcast %47 : vector<1x256xf32> to vector<4x256xf32>
    %54 = arith.mulf %52, %53 : vector<4x256xf32>
    %c0_29 = arith.constant 0 : index
    %c0_30 = arith.constant 0 : index
    %55 = vector.load %arg9[%c0_29, %c0_30] : memref<4x1xf32, #tpu.memory_space<vmem>>, vector<4x1xf32>
    %56 = vector.broadcast %55 : vector<4x1xf32> to vector<4x256xf32>
    %57 = arith.addf %54, %56 : vector<4x256xf32>
    %c0_31 = arith.constant 0 : index
    %c0_32 = arith.constant 0 : index
    %58 = vector.load %arg10[%c0_31, %c0_32] : memref<4x256xf32, #tpu.memory_space<vmem>>, vector<4x256xf32>
    tpu.vector_store %arg10[%c0_31, %c0_32], %57 {strides = array<i32>} : memref<4x256xf32, #tpu.memory_space<vmem>>, vector<4x256xf32>,
    return
  }
  func.func @transform_0(%arg0: i32) -> (i32, i32) {
    %c0_i32 = arith.constant 0 : i32
    %c0_i32_0 = arith.constant 0 : i32
    return %c0_i32, %arg0 : i32, i32
  }
  func.func @transform_1(%arg0: i32) -> (i32, i32) {
    %c0_i32 = arith.constant 0 : i32
    %c0_i32_0 = arith.constant 0 : i32
    %c0_i32_1 = arith.constant 0 : i32
    return %c0_i32, %c0_i32_0 : i32, i32
  }
  func.func @transform_2(%arg0: i32) -> (i32, i32) {
    %c0_i32 = arith.constant 0 : i32
    %c0_i32_0 = arith.constant 0 : i32
    %c0_i32_1 = arith.constant 0 : i32
    return %c0_i32, %c0_i32_0 : i32, i32
  }
  func.func @transform_3(%arg0: i32) -> (i32, i32) {
    %c0_i32 = arith.constant 0 : i32
    %c0_i32_0 = arith.constant 0 : i32
    %c0_i32_1 = arith.constant 0 : i32
    return %c0_i32, %c0_i32_0 : i32, i32
  }
  func.func @transform_4(%arg0: i32) -> (i32, i32) {
    %c0_i32 = arith.constant 0 : i32
    %c0_i32_0 = arith.constant 0 : i32
    %c0_i32_1 = arith.constant 0 : i32
    return %c0_i32, %c0_i32_0 : i32, i32
  }
  func.func @transform_5(%arg0: i32) -> (i32, i32) {
    %c0_i32 = arith.constant 0 : i32
    %c0_i32_0 = arith.constant 0 : i32
    %c0_i32_1 = arith.constant 0 : i32
    return %c0_i32, %c0_i32_0 : i32, i32
  }
  func.func @transform_6(%arg0: i32) -> (i32, i32) {
    %c0_i32 = arith.constant 0 : i32
    %c0_i32_0 = arith.constant 0 : i32
    %c0_i32_1 = arith.constant 0 : i32
    return %c0_i32, %c0_i32_0 : i32, i32
  }
  func.func @transform_7(%arg0: i32) -> (i32, i32) {
    %c0_i32 = arith.constant 0 : i32
    %c0_i32_0 = arith.constant 0 : i32
    %c0_i32_1 = arith.constant 0 : i32
    return %c0_i32, %c0_i32_0 : i32, i32
  }
  func.func @transform_8(%arg0: i32) -> (i32, i32) {
    %c0_i32 = arith.constant 0 : i32
    %c0_i32_0 = arith.constant 0 : i32
    %c0_i32_1 = arith.constant 0 : i32
    return %c0_i32, %c0_i32_0 : i32, i32
  }
  func.func @transform_9(%arg0: i32) -> (i32, i32) {
    %c0_i32 = arith.constant 0 : i32
    %c0_i32_0 = arith.constant 0 : i32
    return %c0_i32, %arg0 : i32, i32
  }
}

</mosaic_0001>

<llo_original>
// kernel: pre_htsk_forward.1
$region0: #{pre_htsk_forward.1}
  #allocation0 [shape = 'u32[]', space=smem, size = 0x4, offset = 0x4, fixed_abs, tag = 'smem constant byte address 0x4 - core index']
  #allocation1 [shape = 'u32[144,128]{1,0:T(1,128)}', space=vmem, size = 0x12000, scoped, tag = 'internal scratch']
  %s0 = inlined_call_operand.vmem [shape: f32[16,512], index: 0, kind: input, shape index: {}]
  %s1 = inlined_call_operand.vmem [shape: f32[8,32], index: 1, kind: input, shape index: {}]
  %s2 = inlined_call_operand.vmem [shape: f32[8,1], index: 2, kind: input, shape index: {}]
  %s3 = inlined_call_operand.vmem [shape: f32[32,16], index: 3, kind: input, shape index: {}]
  %s4 = inlined_call_operand.vmem [shape: f32[32,8], index: 4, kind: input, shape index: {}]
  %s5 = inlined_call_operand.vmem [shape: f32[4,32], index: 5, kind: input, shape index: {}]
  %s6 = inlined_call_operand.vmem [shape: f32[4,8], index: 6, kind: input, shape index: {}]
  %s7 = inlined_call_operand.vmem [shape: f32[4,1], index: 7, kind: input, shape index: {}]
  %s8 = inlined_call_operand.vmem [shape: f32[4,1], index: 8, kind: input, shape index: {}]
  %s9 = inlined_call_operand.hbm [shape: f32[4,512], index: 9, kind: output, shape index: {}]
  %s10 = sld [smem:[#allocation0]]
  $region92: #{pre_htsk_forward.1} parent=0
    _
  %s12 = ssub.s32 1, %s10
  %s13 = scalar_select 0, %s12, %s10
  $region1: #{pre_htsk_forward.1} parent=0
    #allocation2 [shape = 'u8[32768]{0}', space=vmem, size = 0x8000, scoped, tag = 'input window, operand 0']
    #allocation3 [shape = 'u8[8192]{0}', space=vmem, size = 0x2000, scoped, tag = 'output window, operand 0']
    #allocation4 [shape = 's32[2]{0}', space=sflag, size = 0x8, scoped, tag = 'scoped memory for pre_htsk_forward.1']
    %14 = vsyncpa [#allocation4], 0
    %s15 = scalar_lea.sflag [#allocation4], 1
    %16 = vsyncpa %s15, 0
    loop: start=0, step=1, limit=4
    $region2: #{pre_htsk_forward.1} parent=1 // loop_pre_header
      _
    $region3: #{pre_htsk_forward.1} parent=1 // loop_header
      %s18 = sphi 0, %s22
      %p19 = scmp.ge.s32.totalorder %s18, 4
      %s28 = sphi 0, %s30
      %s31 = sphi 0, %s28
      %s32 = sphi 0, %s31
      %s48 = sphi 0, %s32
      %s52 = sphi 0, %s52
      %s54 = sphi 0, %s52
      %s55 = sphi 0, %s54
      %s69 = sphi 0, %s55
      %s73 = sphi 0, %s73
      %s75 = sphi 0, %s73
      %s76 = sphi 0, %s75
      %s90 = sphi 0, %s76
      %s94 = sphi 0, %s94
      %s96 = sphi 0, %s94
      %s97 = sphi 0, %s96
      %s111 = sphi 0, %s97
      %s115 = sphi 0, %s115
      %s117 = sphi 0, %s115
      %s118 = sphi 0, %s117
      %s132 = sphi 0, %s118
      %s136 = sphi 0, %s136
      %s138 = sphi 0, %s136
      %s139 = sphi 0, %s138
      %s153 = sphi 0, %s139
      %s157 = sphi 0, %s157
      %s159 = sphi 0, %s157
      %s160 = sphi 0, %s159
      %s174 = sphi 0, %s160
      %s178 = sphi 0, %s178
      %s180 = sphi 0, %s178
      %s181 = sphi 0, %s180
      %s195 = sphi 0, %s181
      %s199 = sphi 0, %s199
      %s201 = sphi 0, %s199
      %s202 = sphi 0, %s201
      %s216 = sphi 0, %s202
      %s222 = sphi 0, %s224
      %s225 = sphi 0, %s222
      %s226 = sphi 0, %s225
      %s242 = sphi 0, %s226
    $region4: #{pre_htsk_forward.1} parent=1 // loop_header_branch
      %21 = sbr.rel (%p19) target = $region8
    $region5: #{pre_htsk_forward.1} parent=1 // loop_body
      %s23 = ssub.s32 %s18, 1
      %s24 = ssub.s32 %s18, 2
      %s25 = sadd.s32 %s18, 1
      %s26 = ssub.s32 %s18, %s25
      %p27 = scmp.eq.s32.totalorder %s26, 0
      %s29 = sadd.s32 %s28, 1
      %s30 = scalar_select %p27, %s28, %s29
      %p33 = pneg %p27
      %p34 = scmp.eq.s32.totalorder %s18, 1
      %p35 = por %p33, %p34
      %p36 = scmp.ne.s32.totalorder %s28, %s31
      %p37 = scmp.eq.s32.totalorder %s18, 0
      %p38 = por %p36, %p37
      %p39 = scmp.ne.s32.totalorder %s28, %s31
      %p40 = scmp.eq.s32.totalorder %s23, 1
      %p41 = por %p39, %p40
      %p42 = scmp.ne.s32.totalorder %s31, %s32
      %p43 = scmp.eq.s32.totalorder %s23, 0
      %p44 = por %p42, %p43
      %p45 = scmp.ne.s32.totalorder %s31, %s32
      %p46 = scmp.eq.s32.totalorder %s24, 1
      %p47 = por %p45, %p46
      %p49 = scmp.ne.s32.totalorder %s32, %s48
      %p50 = scmp.eq.s32.totalorder %s24, 0
      %p51 = por %p49, %p50
      %s53 = sadd.s32 %s52, 1
      %p56 = scmp.eq.s32.totalorder %s18, 1
      %p57 = scmp.ne.s32.totalorder %s52, %s54
      %p58 = scmp.eq.s32.totalorder %s18, 0
      %p59 = por %p57, %p58
      %p60 = scmp.ne.s32.totalorder %s52, %s54
      %p61 = scmp.eq.s32.totalorder %s23, 1
      %p62 = por %p60, %p61
      %p63 = scmp.ne.s32.totalorder %s54, %s55
      %p64 = scmp.eq.s32.totalorder %s23, 0
      %p65 = por %p63, %p64
      %p66 = scmp.ne.s32.totalorder %s54, %s55
      %p67 = scmp.eq.s32.totalorder %s24, 1
      %p68 = por %p66, %p67
      %p70 = scmp.ne.s32.totalorder %s55, %s69
      %p71 = scmp.eq.s32.totalorder %s24, 0
      %p72 = por %p70, %p71
      %s74 = sadd.s32 %s73, 1
      %p77 = scmp.eq.s32.totalorder %s18, 1
      %p78 = scmp.ne.s32.totalorder %s73, %s75
      %p79 = scmp.eq.s32.totalorder %s18, 0
      %p80 = por %p78, %p79
      %p81 = scmp.ne.s32.totalorder %s73, %s75
      %p82 = scmp.eq.s32.totalorder %s23, 1
      %p83 = por %p81, %p82
      %p84 = scmp.ne.s32.totalorder %s75, %s76
      %p85 = scmp.eq.s32.totalorder %s23, 0
      %p86 = por %p84, %p85
      %p87 = scmp.ne.s32.totalorder %s75, %s76
      %p88 = scmp.eq.s32.totalorder %s24, 1
      %p89 = por %p87, %p88
      %p91 = scmp.ne.s32.totalorder %s76, %s90
      %p92 = scmp.eq.s32.totalorder %s24, 0
      %p93 = por %p91, %p92
      %s95 = sadd.s32 %s94, 1
      %p98 = scmp.eq.s32.totalorder %s18, 1
      %p99 = scmp.ne.s32.totalorder %s94, %s96
      %p100 = scmp.eq.s32.totalorder %s18, 0
      %p101 = por %p99, %p100
      %p102 = scmp.ne.s32.totalorder %s94, %s96
      %p103 = scmp.eq.s32.totalorder %s23, 1
      %p104 = por %p102, %p103
      %p105 = scmp.ne.s32.totalorder %s96, %s97
      %p106 = scmp.eq.s32.totalorder %s23, 0
      %p107 = por %p105, %p106
      %p108 = scmp.ne.s32.totalorder %s96, %s97
      %p109 = scmp.eq.s32.totalorder %s24, 1
      %p110 = por %p108, %p109
      %p112 = scmp.ne.s32.totalorder %s97, %s111
      %p113 = scmp.eq.s32.totalorder %s24, 0
      %p114 = por %p112, %p113
      %s116 = sadd.s32 %s115, 1
      %p119 = scmp.eq.s32.totalorder %s18, 1
      %p120 = scmp.ne.s32.totalorder %s115, %s117
      %p121 = scmp.eq.s32.totalorder %s18, 0
      %p122 = por %p120, %p121
      %p123 = scmp.ne.s32.totalorder %s115, %s117
      %p124 = scmp.eq.s32.totalorder %s23, 1
      %p125 = por %p123, %p124
      %p126 = scmp.ne.s32.totalorder %s117, %s118
      %p127 = scmp.eq.s32.totalorder %s23, 0
      %p128 = por %p126, %p127
      %p129 = scmp.ne.s32.totalorder %s117, %s118
      %p130 = scmp.eq.s32.totalorder %s24, 1
      %p131 = por %p129, %p130
      %p133 = scmp.ne.s32.totalorder %s118, %s132
      %p134 = scmp.eq.s32.totalorder %s24, 0
      %p135 = por %p133, %p134
      %s137 = sadd.s32 %s136, 1
      %p140 = scmp.eq.s32.totalorder %s18, 1
      %p141 = scmp.ne.s32.totalorder %s136, %s138
      %p142 = scmp.eq.s32.totalorder %s18, 0
      %p143 = por %p141, %p142
      %p144 = scmp.ne.s32.totalorder %s136, %s138
      %p145 = scmp.eq.s32.totalorder %s23, 1
      %p146 = por %p144, %p145
      %p147 = scmp.ne.s32.totalorder %s138, %s139
      %p148 = scmp.eq.s32.totalorder %s23, 0
      %p149 = por %p147, %p148
      %p150 = scmp.ne.s32.totalorder %s138, %s139
      %p151 = scmp.eq.s32.totalorder %s24, 1
      %p152 = por %p150, %p151
      %p154 = scmp.ne.s32.totalorder %s139, %s153
      %p155 = scmp.eq.s32.totalorder %s24, 0
      %p156 = por %p154, %p155
      %s158 = sadd.s32 %s157, 1
      %p161 = scmp.eq.s32.totalorder %s18, 1
      %p162 = scmp.ne.s32.totalorder %s157, %s159
      %p163 = scmp.eq.s32.totalorder %s18, 0
      %p164 = por %p162, %p163
      %p165 = scmp.ne.s32.totalorder %s157, %s159
      %p166 = scmp.eq.s32.totalorder %s23, 1
      %p167 = por %p165, %p166
      %p168 = scmp.ne.s32.totalorder %s159, %s160
      %p169 = scmp.eq.s32.totalorder %s23, 0
      %p170 = por %p168, %p169
      %p171 = scmp.ne.s32.totalorder %s159, %s160
      %p172 = scmp.eq.s32.totalorder %s24, 1
      %p173 = por %p171, %p172
      %p175 = scmp.ne.s32.totalorder %s160, %s174
      %p176 = scmp.eq.s32.totalorder %s24, 0
      %p177 = por %p175, %p176
      %s179 = sadd.s32 %s178, 1
      %p182 = scmp.eq.s32.totalorder %s18, 1
      %p183 = scmp.ne.s32.totalorder %s178, %s180
      %p184 = scmp.eq.s32.totalorder %s18, 0
      %p185 = por %p183, %p184
      %p186 = scmp.ne.s32.totalorder %s178, %s180
      %p187 = scmp.eq.s32.totalorder %s23, 1
      %p188 = por %p186, %p187
      %p189 = scmp.ne.s32.totalorder %s180, %s181
      %p190 = scmp.eq.s32.totalorder %s23, 0
      %p191 = por %p189, %p190
      %p192 = scmp.ne.s32.totalorder %s180, %s181
      %p193 = scmp.eq.s32.totalorder %s24, 1
      %p194 = por %p192, %p193
      %p196 = scmp.ne.s32.totalorder %s181, %s195
      %p197 = scmp.eq.s32.totalorder %s24, 0
      %p198 = por %p196, %p197
      %s200 = sadd.s32 %s199, 1
      %p203 = scmp.eq.s32.totalorder %s18, 1
      %p204 = scmp.ne.s32.totalorder %s199, %s201
      %p205 = scmp.eq.s32.totalorder %s18, 0
      %p206 = por %p204, %p205
      %p207 = scmp.ne.s32.totalorder %s199, %s201
      %p208 = scmp.eq.s32.totalorder %s23, 1
      %p209 = por %p207, %p208
      %p210 = scmp.ne.s32.totalorder %s201, %s202
      %p211 = scmp.eq.s32.totalorder %s23, 0
      %p212 = por %p210, %p211
      %p213 = scmp.ne.s32.totalorder %s201, %s202
      %p214 = scmp.eq.s32.totalorder %s24, 1
      %p215 = por %p213, %p214
      %p217 = scmp.ne.s32.totalorder %s202, %s216
      %p218 = scmp.eq.s32.totalorder %s24, 0
      %p219 = por %p217, %p218
      %s220 = ssub.s32 %s18, %s25
      %p221 = scmp.eq.s32.totalorder %s220, 0
      %s223 = sadd.s32 %s222, 1
      %s224 = scalar_select %p221, %s222, %s223
      %p227 = pneg %p221
      %p228 = scmp.eq.s32.totalorder %s18, 1
      %p229 = por %p227, %p228
      %p230 = scmp.ne.s32.totalorder %s222, %s225
      %p231 = scmp.eq.s32.totalorder %s18, 0
      %p232 = por %p230, %p231
      %p233 = scmp.ne.s32.totalorder %s222, %s225
      %p234 = scmp.eq.s32.totalorder %s23, 1
      %p235 = por %p233, %p234
      %p236 = scmp.ne.s32.totalorder %s225, %s226
      %p237 = scmp.eq.s32.totalorder %s23, 0
      %p238 = por %p236, %p237
      %p239 = scmp.ne.s32.totalorder %s225, %s226
      %p240 = scmp.eq.s32.totalorder %s24, 1
      %p241 = por %p239, %p240
      %p243 = scmp.ne.s32.totalorder %s226, %s242
      %p244 = scmp.eq.s32.totalorder %s24, 0
      %p245 = por %p243, %p244
      %p246 = scmp.le.s32.totalorder 1, %s18
      %p247 = scmp.lt.s32.totalorder %s18, 3
      %p248 = pnand %p246, %p247
      %p249 = pneg %p248
      // Predicated region
      $region9: #{pre_htsk_forward.1} parent=5 // pred_check
        _
      $region10: #{pre_htsk_forward.1} parent=5 // pred_check_branch
        %251 = sbr.rel (%p248) target = $region12
      $region11: #{pre_htsk_forward.1} parent=5 // pred_region
        %s252 = ssub.s32 %s18, 1
        // Predicated region
        $region13: #{pre_htsk_forward.1} parent=11 // pred_check
          %p253 = pneg %p65
        $region14: #{pre_htsk_forward.1} parent=11 // pred_check_branch
          %255 = sbr.rel (%p253) target = $region16
        $region15: #{pre_htsk_forward.1} parent=11 // pred_region
          _
        $region16: #{pre_htsk_forward.1} parent=11 // pred_fallthru
          _
        // Predicated region
        $region17: #{pre_htsk_forward.1} parent=11 // pred_check
          %p256 = pneg %p86
        $region18: #{pre_htsk_forward.1} parent=11 // pred_check_branch
          %258 = sbr.rel (%p256) target = $region20
        $region19: #{pre_htsk_forward.1} parent=11 // pred_region
          _
        $region20: #{pre_htsk_forward.1} parent=11 // pred_fallthru
          _
        // Predicated region
        $region21: #{pre_htsk_forward.1} parent=11 // pred_check
          %p259 = pneg %p107
        $region22: #{pre_htsk_forward.1} parent=11 // pred_check_branch
          %261 = sbr.rel (%p259) target = $region24
        $region23: #{pre_htsk_forward.1} parent=11 // pred_region
          _
        $region24: #{pre_htsk_forward.1} parent=11 // pred_fallthru
          _
        // Predicated region
        $region25: #{pre_htsk_forward.1} parent=11 // pred_check
          %p262 = pneg %p128
        $region26: #{pre_htsk_forward.1} parent=11 // pred_check_branch
          %264 = sbr.rel (%p262) target = $region28
        $region27: #{pre_htsk_forward.1} parent=11 // pred_region
          _
        $region28: #{pre_htsk_forward.1} parent=11 // pred_fallthru
          _
        // Predicated region
        $region29: #{pre_htsk_forward.1} parent=11 // pred_check
          %p265 = pneg %p149
        $region30: #{pre_htsk_forward.1} parent=11 // pred_check_branch
          %267 = sbr.rel (%p265) target = $region32
        $region31: #{pre_htsk_forward.1} parent=11 // pred_region
          _
        $region32: #{pre_htsk_forward.1} parent=11 // pred_fallthru
          _
        // Predicated region
        $region33: #{pre_htsk_forward.1} parent=11 // pred_check
          %p268 = pneg %p170
        $region34: #{pre_htsk_forward.1} parent=11 // pred_check_branch
          %270 = sbr.rel (%p268) target = $region36
        $region35: #{pre_htsk_forward.1} parent=11 // pred_region
          _
        $region36: #{pre_htsk_forward.1} parent=11 // pred_fallthru
          _
        // Predicated region
        $region37: #{pre_htsk_forward.1} parent=11 // pred_check
          %p271 = pneg %p191
        $region38: #{pre_htsk_forward.1} parent=11 // pred_check_branch
          %273 = sbr.rel (%p271) target = $region40
        $region39: #{pre_htsk_forward.1} parent=11 // pred_region
          _
        $region40: #{pre_htsk_forward.1} parent=11 // pred_fallthru
          _
        // Predicated region
        $region41: #{pre_htsk_forward.1} parent=11 // pred_check
          %p274 = pneg %p212
        $region42: #{pre_htsk_forward.1} parent=11 // pred_check_branch
          %276 = sbr.rel (%p274) target = $region44
        $region43: #{pre_htsk_forward.1} parent=11 // pred_region
          _
        $region44: #{pre_htsk_forward.1} parent=11 // pred_fallthru
          _
      $region12: #{pre_htsk_forward.1} parent=5 // pred_fallthru
        _
      %p277 = scmp.lt.s32.totalorder %s18, 2
      // Predicated region
      $region45: #{pre_htsk_forward.1} parent=5 // pred_check
        %p278 = pneg %p277
      $region46: #{pre_htsk_forward.1} parent=5 // pred_check_branch
        %280 = sbr.rel (%p278) target = $region48
      $region47: #{pre_htsk_forward.1} parent=5 // pred_region
        // Predicated region
        $region49: #{pre_htsk_forward.1} parent=47 // pred_check
          %p281 = pneg %p38
        $region50: #{pre_htsk_forward.1} parent=47 // pred_check_branch
          %283 = sbr.rel (%p281) target = $region52
        $region51: #{pre_htsk_forward.1} parent=47 // pred_region
          %s284 = sand.u32 %s28, 1
          %s285 = sand.u32 %s28, 1
          %s286 = smul.addr %s285, 32
          %s287 = scalar_lea.vmem [#allocation2], %s286
          %s288 = smul.u32 2, %s18
          %s289 = smul.addr %s288, 8
          %s290 = scalar_lea.vmem %s0, %s289
          // Predicated region
          $region53: #{pre_htsk_forward.1} parent=51 // pred_check
            _
          $region54: #{pre_htsk_forward.1} parent=51 // pred_check_branch
            %292 = sbr.rel (0) target = $region56
          $region55: #{pre_htsk_forward.1} parent=51 // pred_region
            // Predicated region
            $region57: #{pre_htsk_forward.1} parent=55 // pred_check
              _
            $region58: #{pre_htsk_forward.1} parent=55 // pred_check_branch
              %294 = sbr.rel (0) target = $region60
            $region59: #{pre_htsk_forward.1} parent=55 // pred_region
              loop: start=0, step=1, limit=1
              $region61: #{pre_htsk_forward.1} parent=59 // loop_pre_header
                _
              $region62: #{pre_htsk_forward.1} parent=59 // loop_header
                %s296 = sphi 0, %s300
                %p297 = scmp.ge.s32.totalorder %s296, 1
                %s301 = sphi %s290, %s290
                %s302 = sphi %s287, %s287
              $region63: #{pre_htsk_forward.1} parent=59 // loop_header_branch
                %299 = sbr.rel (%p297) target = $region67
              $region64: #{pre_htsk_forward.1} parent=59 // loop_body
                %v303 = vld [vmem:[%s301] sm:$0xff]
                %304 = vst [vmem:[%s302] sm:$0xff] %v303
                %v305 = vld [vmem:[%s301 + $0x8] sm:$0xff]
                %306 = vst [vmem:[%s302 + $0x8] sm:$0xff] %v305
                %v307 = vld [vmem:[%s301 + $0x20] sm:$0xff]
                %308 = vst [vmem:[%s302 + $0x10] sm:$0xff] %v307
                %v309 = vld [vmem:[%s301 + $0x28] sm:$0xff]
                %310 = vst [vmem:[%s302 + $0x18] sm:$0xff] %v309
              $region65: #{pre_htsk_forward.1} parent=59 // loop_footer
                %s300 = sadd.s32 1, %s296
              $region66: #{pre_htsk_forward.1} parent=59 // loop_footer_branch
                %295 = sbr.rel target = $region62
              $region67: #{pre_htsk_forward.1} parent=59 // loop_exit
                _
            $region60: #{pre_htsk_forward.1} parent=55 // pred_fallthru
              _
            // Predicated region
            $region68: #{pre_htsk_forward.1} parent=55 // pred_check
              _
            $region69: #{pre_htsk_forward.1} parent=55 // pred_check_branch
              %312 = sbr.rel target = $region71
            $region70: #{pre_htsk_forward.1} parent=55 // pred_region
              _
            $region71: #{pre_htsk_forward.1} parent=55 // pred_fallthru
              _
          $region56: #{pre_htsk_forward.1} parent=51 // pred_fallthru
            _
          %313 = vnop
        $region52: #{pre_htsk_forward.1} parent=47 // pred_fallthru
          _
      $region48: #{pre_htsk_forward.1} parent=5 // pred_fallthru
        _
      %p314 = scmp.le.s32.totalorder 1, %s18
      %p315 = scmp.lt.s32.totalorder %s18, 3
      %p316 = pnand %p314, %p315
      %p317 = pneg %p316
      // Predicated region
      $region72: #{pre_htsk_forward.1} parent=5 // pred_check
        _
      $region73: #{pre_htsk_forward.1} parent=5 // pred_check_branch
        %319 = sbr.rel (%p316) target = $region75
      $region74: #{pre_htsk_forward.1} parent=5 // pred_region
        %s320 = ssub.s32 %s18, 1
        %s321 = sand.u32 %s31, 1
        %s322 = sand.u32 %s31, 1
        %s323 = smul.addr %s322, 32
        %s324 = scalar_lea.vmem [#allocation2], %s323
        // Predicated region
        $region76: #{pre_htsk_forward.1} parent=74 // pred_check
          %p325 = pneg %p44
        $region77: #{pre_htsk_forward.1} parent=74 // pred_check_branch
          %327 = sbr.rel (%p325) target = $region79
        $region78: #{pre_htsk_forward.1} parent=74 // pred_region
          _
        $region79: #{pre_htsk_forward.1} parent=74 // pred_fallthru
          _
        %s328 = sand.u32 %s31, 1
        %s329 = sand.u32 %s31, 1
        %s330 = smul.addr %s329, 32
        %s331 = scalar_lea.vmem [#allocation2], %s330
        %p332 = pneg %p44
        %p333 = pneg %p41
        %p334 = pneg %p65
        %p335 = pneg %p62
        %p336 = pneg %p86
        %p337 = pneg %p83
        %p338 = pneg %p107
        %p339 = pneg %p104
        %p340 = pneg %p128
        %p341 = pneg %p125
        %p342 = pneg %p149
        %p343 = pneg %p146
        %p344 = pneg %p170
        %p345 = pneg %p167
        %p346 = pneg %p191
        %p347 = pneg %p188
        %p348 = pneg %p212
        %p349 = pneg %p209
        %p350 = pneg %p238
        %p351 = pneg %p235
        %s352 = sand.u32 %s225, 1
        %s353 = scalar_lea.sflag [#allocation4], %s352
        %s354 = sand.u32 %s225, 1
        %s355 = smul.addr %s354, 8
        %s356 = scalar_lea.vmem [#allocation3], %s355
        %s357 = smul.u32 2, %s23
        %s358 = smul.u32 2, %s23
        %v359 = vld [vmem:[%s324] sm:$0xff]
        %v360 = vld [vmem:[%s324 + $0x8] sm:$0xff]
        %v361 = vld [vmem:[%s324 + $0x10] sm:$0xff]
        %v362 = vld [vmem:[%s324 + $0x18] sm:$0xff]
        %v363 = vmul.f32 %v359, %v359
        %v364 = vmul.f32 %v360, %v360
        %v365 = vmul.f32 %v361, %v361
        %v366 = vmul.f32 %v362, %v362
        %v367 = vld [vmem:[%s1] sm:$0xff]
        %v368 = vld [vmem:[%s2] sm:$0xff]
        %370 = vset.pattern.permute.xlu0 0
        %371 = vperm.xlu0 %370, %v368
        %v372 = vpop.permute.xlu0 %371
        %vm374 = vcmask 261120
        %v376 = vsel %vm374, %v367, 0
        %378 = vmatprep.subr.mxu0 %v364
        %379 = vmatpush1.msra.mxu0 %v363
        %380 = vmatprep.subr.mxu0 %v366
        %381 = vmatpush1.msra.mxu0 %v365
        %382 = vmatprep.subr.mxu0 %v360
        %383 = vmatpush1.msra.mxu0 %v359
        %384 = vmatprep.subr.mxu0 %v362
        %385 = vmatpush1.msra.mxu0 %v361
        %386 = vmatprep.subr.mxu0 0.0
        %387 = vmatpush1.msra.mxu0 0.0
        %388 = vmatprep.subr.mxu0 0.0
        %389 = vmatpush1.msra.mxu0 0.0
        %390 = vmatprep.subr.mxu0 0.0
        %391 = vmatpush1.msra.mxu0 0.0
        %392 = vmatprep.subr.mxu0 0.0
        %393 = vmatpush1.msra.mxu0 0.0
        %394 = vmatprep.subr.mxu0 0.0
        %395 = vmatpush1.msra.mxu0 0.0
        %396 = vmatprep.subr.mxu0 0.0
        %397 = vmatpush1.msra.mxu0 0.0
        %398 = vmatprep.subr.mxu0 0.0
        %399 = vmatpush1.msra.mxu0 0.0
        %400 = vmatprep.subr.mxu0 0.0
        %401 = vmatpush1.msra.mxu0 0.0
        %402 = vmatprep.subr.mxu0 0.0
        %403 = vmatpush1.msra.mxu0 0.0
        %404 = vmatprep.subr.mxu0 0.0
        %405 = vmatpush1.msra.mxu0 0.0
        %406 = vmatprep.subr.mxu0 0.0
        %407 = vmatpush1.msra.mxu0 0.0
        %408 = vmatprep.subr.mxu0 0.0
        %409 = vmatpush1.msra.mxu0 0.0
        %410 = vmatprep.subr.mxu0 0.0
        %411 = vmatpush1.msra.mxu0 0.0
        %412 = vmatprep.subr.mxu0 0.0
        %413 = vmatpush1.msra.mxu0 0.0
        %414 = vmatprep.subr.mxu0 0.0
        %415 = vmatpush1.msra.mxu0 0.0
        %416 = vmatprep.subr.mxu0 0.0
        %417 = vmatpush1.msra.mxu0 0.0
        %418 = vmatprep.subr.mxu0 0.0
        %419 = vmatpush1.msra.mxu0 0.0
        %420 = vmatprep.subr.mxu0 0.0
        %421 = vmatpush1.msra.mxu0 0.0
        %422 = vmatprep.subr.mxu0 0.0
        %423 = vmatpush1.msra.mxu0 0.0
        %424 = vmatprep.subr.mxu0 0.0
        %425 = vmatpush1.msra.mxu0 0.0
        %426 = vmatprep.subr.mxu0 0.0
        %427 = vmatpush1.msra.mxu0 0.0
        %428 = vmatprep.subr.mxu0 0.0
        %429 = vmatpush1.msra.mxu0 0.0
        %430 = vmatprep.subr.mxu0 0.0
        %431 = vmatpush1.msra.mxu0 0.0
        %432 = vmatprep.subr.mxu0 0.0
        %433 = vmatpush1.msra.mxu0 0.0
        %434 = vmatprep.subr.mxu0 0.0
        %435 = vmatpush1.msra.mxu0 0.0
        %436 = vmatprep.subr.mxu0 0.0
        %437 = vmatpush1.msra.mxu0 0.0
        %438 = vmatprep.subr.mxu0 0.0
        %439 = vmatpush1.msra.mxu0 0.0
        %440 = vmatprep.subr.mxu0 0.0
        %441 = vmatpush1.msra.mxu0 0.0
        %442 = vmatprep.mubr.f32.mxu0 0.0
        %443 = vmatmul.mubr.f32.gmra.mrb[0].mxu0 %v376
        %v444 = vpop.f32.mrb[0].mxu0
        %v445 = vadd.f32 %v372, %v444
        %v446 = vpop.f32.mrb[0].mxu0
        %v447 = vadd.f32 %v372, %v446
        %448 = vdwg.mxu0
        %v449 = vrot.slane %v445, 4
        %v450 = vmax.f32 %v445, %v449
        %v451 = vrot.slane %v450, 2
        %v452 = vmax.f32 %v450, %v451
        %v453 = vrot.slane %v452, 1
        %v454 = vmax.f32 %v452, %v453
        %v455 = vrot.slane %v447, 4
        %v456 = vmax.f32 %v447, %v455
        %v457 = vrot.slane %v456, 2
        %v458 = vmax.f32 %v456, %v457
        %v459 = vrot.slane %v458, 1
        %v460 = vmax.f32 %v458, %v459
        %v461 = vsub.f32 %v445, %v454
        %v462 = vsub.f32 %v447, %v460
        %v463 = vmul.f32 %v461, 1.442695
        %v464 = vpow.pop %v463
        %v465 = vmul.f32 %v462, 1.442695
        %v466 = vpow.pop %v465
        %v467 = vrot.slane %v464, 4
        %v468 = vadd.f32 %v464, %v467
        %v469 = vrot.slane %v468, 2
        %v470 = vadd.f32 %v468, %v469
        %v471 = vrot.slane %v470, 1
        %v472 = vadd.f32 %v470, %v471
        %v473 = vrot.slane %v466, 4
        %v474 = vadd.f32 %v466, %v473
        %v475 = vrot.slane %v474, 2
        %v476 = vadd.f32 %v474, %v475
        %v477 = vrot.slane %v476, 1
        %v478 = vadd.f32 %v476, %v477
        %v479 = vrcp.pop %v472
        %v480 = vmul.f32 %v464, %v479
        %v481 = vrcp.pop %v478
        %v482 = vmul.f32 %v466, %v481
        %v483 = vld [vmem:[%s3] sm:$0xff]
        %v484 = vld [vmem:[%s3 + $0x8] sm:$0xff]
        %v485 = vld [vmem:[%s3 + $0x10] sm:$0xff]
        %v486 = vld [vmem:[%s3 + $0x18] sm:$0xff]
        %vm487 = vcmask 130048
        %v489 = vsel %vm487, %v483, 0
        %v492 = vsel %vm487, %v484, 0
        %v495 = vsel %vm487, %v485, 0
        %v498 = vsel %vm487, %v486, 0
        %500 = vmatprep.subr.mxu0 %v360
        %501 = vmatpush1.msra.mxu0 %v359
        %502 = vmatprep.subr.mxu0 %v362
        %503 = vmatpush1.msra.mxu0 %v361
        %504 = vmatprep.subr.mxu0 0.0
        %505 = vmatpush1.msra.mxu0 0.0
        %506 = vmatprep.subr.mxu0 0.0
        %507 = vmatpush1.msra.mxu0 0.0
        %508 = vmatprep.subr.mxu0 0.0
        %509 = vmatpush1.msra.mxu0 0.0
        %510 = vmatprep.subr.mxu0 0.0
        %511 = vmatpush1.msra.mxu0 0.0
        %512 = vmatprep.subr.mxu0 0.0
        %513 = vmatpush1.msra.mxu0 0.0
        %514 = vmatprep.subr.mxu0 0.0
        %515 = vmatpush1.msra.mxu0 0.0
        %516 = vmatprep.subr.mxu0 0.0
        %517 = vmatpush1.msra.mxu0 0.0
        %518 = vmatprep.subr.mxu0 0.0
        %519 = vmatpush1.msra.mxu0 0.0
        %520 = vmatprep.subr.mxu0 0.0
        %521 = vmatpush1.msra.mxu0 0.0
        %522 = vmatprep.subr.mxu0 0.0
        %523 = vmatpush1.msra.mxu0 0.0
        %524 = vmatprep.subr.mxu0 0.0
        %525 = vmatpush1.msra.mxu0 0.0
        %526 = vmatprep.subr.mxu0 0.0
        %527 = vmatpush1.msra.mxu0 0.0
        %528 = vmatprep.subr.mxu0 0.0
        %529 = vmatpush1.msra.mxu0 0.0
        %530 = vmatprep.subr.mxu0 0.0
        %531 = vmatpush1.msra.mxu0 0.0
        %532 = vmatprep.subr.mxu0 0.0
        %533 = vmatpush1.msra.mxu0 0.0
        %534 = vmatprep.subr.mxu0 0.0
        %535 = vmatpush1.msra.mxu0 0.0
        %536 = vmatprep.subr.mxu0 0.0
        %537 = vmatpush1.msra.mxu0 0.0
        %538 = vmatprep.subr.mxu0 0.0
        %539 = vmatpush1.msra.mxu0 0.0
        %540 = vmatprep.subr.mxu0 0.0
        %541 = vmatpush1.msra.mxu0 0.0
        %542 = vmatprep.subr.mxu0 0.0
        %543 = vmatpush1.msra.mxu0 0.0
        %544 = vmatprep.subr.mxu0 0.0
        %545 = vmatpush1.msra.mxu0 0.0
        %546 = vmatprep.subr.mxu0 0.0
        %547 = vmatpush1.msra.mxu0 0.0
        %548 = vmatprep.subr.mxu0 0.0
        %549 = vmatpush1.msra.mxu0 0.0
        %550 = vmatprep.subr.mxu0 0.0
        %551 = vmatpush1.msra.mxu0 0.0
        %552 = vmatprep.subr.mxu0 0.0
        %553 = vmatpush1.msra.mxu0 0.0
        %554 = vmatprep.subr.mxu0 0.0
        %555 = vmatpush1.msra.mxu0 0.0
        %556 = vmatprep.subr.mxu0 0.0
        %557 = vmatpush1.msra.mxu0 0.0
        %558 = vmatprep.subr.mxu0 0.0
        %559 = vmatpush1.msra.mxu0 0.0
        %560 = vmatprep.subr.mxu0 0.0
        %561 = vmatpush1.msra.mxu0 0.0
        %562 = vmatprep.subr.mxu0 0.0
        %563 = vmatpush1.msra.mxu0 0.0
        %564 = vmatprep.mubr.f32.mxu0 0.0
        %565 = vmatmul.mubr.f32.gmra.mrb[0].mxu0 %v489
        %v566 = vpop.f32.mrb[0].mxu0
        %v567 = vadd.f32 0.0, %v566
        %v568 = vpop.f32.mrb[0].mxu0
        %v569 = vadd.f32 0.0, %v568
        %570 = vmatprep.mubr.f32.mxu0 0.0
        %571 = vmatmul.mubr.f32.gmra.mrb[0].mxu0 %v492
        %v572 = vpop.f32.mrb[0].mxu0
        %v573 = vadd.f32 0.0, %v572
        %v574 = vpop.f32.mrb[0].mxu0
        %v575 = vadd.f32 0.0, %v574
        %576 = vmatprep.mubr.f32.mxu0 0.0
        %577 = vmatmul.mubr.f32.gmra.mrb[0].mxu0 %v495
        %v578 = vpop.f32.mrb[0].mxu0
        %v579 = vadd.f32 0.0, %v578
        %v580 = vpop.f32.mrb[0].mxu0
        %v581 = vadd.f32 0.0, %v580
        %582 = vmatprep.mubr.f32.mxu0 0.0
        %583 = vmatmul.mubr.f32.gmra.mrb[0].mxu0 %v498
        %v584 = vpop.f32.mrb[0].mxu0
        %v585 = vadd.f32 0.0, %v584
        %v586 = vpop.f32.mrb[0].mxu0
        %v587 = vadd.f32 0.0, %v586
        %588 = vdwg.mxu0
        %v589 = vld [vmem:[%s4] sm:$0xff]
        %v590 = vld [vmem:[%s4 + $0x8] sm:$0xff]
        %v591 = vld [vmem:[%s4 + $0x10] sm:$0xff]
        %v592 = vld [vmem:[%s4 + $0x18] sm:$0xff]
        %vm593 = vcmask 64512
        %v595 = vsel %vm593, %v589, 0
        %v598 = vsel %vm593, %v590, 0
        %v601 = vsel %vm593, %v591, 0
        %v604 = vsel %vm593, %v592, 0
        %606 = vmatprep.subr.mxu0 %v482
        %607 = vmatpush1.msra.mxu0 %v480
        %608 = vmatprep.subr.mxu0 0.0
        %609 = vmatpush1.msra.mxu0 0.0
        %610 = vmatprep.subr.mxu0 0.0
        %611 = vmatpush1.msra.mxu0 0.0
        %612 = vmatprep.subr.mxu0 0.0
        %613 = vmatpush1.msra.mxu0 0.0
        %614 = vmatprep.subr.mxu0 0.0
        %615 = vmatpush1.msra.mxu0 0.0
        %616 = vmatprep.subr.mxu0 0.0
        %617 = vmatpush1.msra.mxu0 0.0
        %618 = vmatprep.subr.mxu0 0.0
        %619 = vmatpush1.msra.mxu0 0.0
        %620 = vmatprep.subr.mxu0 0.0
        %621 = vmatpush1.msra.mxu0 0.0
        %622 = vmatprep.subr.mxu0 0.0
        %623 = vmatpush1.msra.mxu0 0.0
        %624 = vmatprep.subr.mxu0 0.0
        %625 = vmatpush1.msra.mxu0 0.0
        %626 = vmatprep.subr.mxu0 0.0
        %627 = vmatpush1.msra.mxu0 0.0
        %628 = vmatprep.subr.mxu0 0.0
        %629 = vmatpush1.msra.mxu0 0.0
        %630 = vmatprep.subr.mxu0 0.0
        %631 = vmatpush1.msra.mxu0 0.0
        %632 = vmatprep.subr.mxu0 0.0
        %633 = vmatpush1.msra.mxu0 0.0
        %634 = vmatprep.subr.mxu0 0.0
        %635 = vmatpush1.msra.mxu0 0.0
        %636 = vmatprep.subr.mxu0 0.0
        %637 = vmatpush1.msra.mxu0 0.0
        %638 = vmatprep.subr.mxu0 0.0
        %639 = vmatpush1.msra.mxu0 0.0
        %640 = vmatprep.subr.mxu0 0.0
        %641 = vmatpush1.msra.mxu0 0.0
        %642 = vmatprep.subr.mxu0 0.0
        %643 = vmatpush1.msra.mxu0 0.0
        %644 = vmatprep.subr.mxu0 0.0
        %645 = vmatpush1.msra.mxu0 0.0
        %646 = vmatprep.subr.mxu0 0.0
        %647 = vmatpush1.msra.mxu0 0.0
        %648 = vmatprep.subr.mxu0 0.0
        %649 = vmatpush1.msra.mxu0 0.0
        %650 = vmatprep.subr.mxu0 0.0
        %651 = vmatpush1.msra.mxu0 0.0
        %652 = vmatprep.subr.mxu0 0.0
        %653 = vmatpush1.msra.mxu0 0.0
        %654 = vmatprep.subr.mxu0 0.0
        %655 = vmatpush1.msra.mxu0 0.0
        %656 = vmatprep.subr.mxu0 0.0
        %657 = vmatpush1.msra.mxu0 0.0
        %658 = vmatprep.subr.mxu0 0.0
        %659 = vmatpush1.msra.mxu0 0.0
        %660 = vmatprep.subr.mxu0 0.0
        %661 = vmatpush1.msra.mxu0 0.0
        %662 = vmatprep.subr.mxu0 0.0
        %663 = vmatpush1.msra.mxu0 0.0
        %664 = vmatprep.subr.mxu0 0.0
        %665 = vmatpush1.msra.mxu0 0.0
        %666 = vmatprep.subr.mxu0 0.0
        %667 = vmatpush1.msra.mxu0 0.0
        %668 = vmatprep.subr.mxu0 0.0
        %669 = vmatpush1.msra.mxu0 0.0
        %670 = vmatprep.mubr.f32.mxu0 0.0
        %671 = vmatmul.mubr.f32.gmra.mrb[0].mxu0 %v595
        %v672 = vpop.f32.mrb[0].mxu0
        %v673 = vadd.f32 0.0, %v672
        %v674 = vpop.f32.mrb[0].mxu0
        %v675 = vadd.f32 0.0, %v674
        %676 = vmatprep.mubr.f32.mxu0 0.0
        %677 = vmatmul.mubr.f32.gmra.mrb[0].mxu0 %v598
        %v678 = vpop.f32.mrb[0].mxu0
        %v679 = vadd.f32 0.0, %v678
        %v680 = vpop.f32.mrb[0].mxu0
        %v681 = vadd.f32 0.0, %v680
        %682 = vmatprep.mubr.f32.mxu0 0.0
        %683 = vmatmul.mubr.f32.gmra.mrb[0].mxu0 %v601
        %v684 = vpop.f32.mrb[0].mxu0
        %v685 = vadd.f32 0.0, %v684
        %v686 = vpop.f32.mrb[0].mxu0
        %v687 = vadd.f32 0.0, %v686
        %688 = vmatprep.mubr.f32.mxu0 0.0
        %689 = vmatmul.mubr.f32.gmra.mrb[0].mxu0 %v604
        %v690 = vpop.f32.mrb[0].mxu0
        %v691 = vadd.f32 0.0, %v690
        %v692 = vpop.f32.mrb[0].mxu0
        %v693 = vadd.f32 0.0, %v692
        %694 = vdwg.mxu0
        %v695 = vld [vmem:[%s5] sm:$0xf]
        %v696 = vmul.f32 %v567, %v673
        %v697 = vmul.f32 %v569, %v675
        %v698 = vmul.f32 %v573, %v679
        %v699 = vmul.f32 %v575, %v681
        %v700 = vmul.f32 %v579, %v685
        %v701 = vmul.f32 %v581, %v687
        %v702 = vmul.f32 %v585, %v691
        %v703 = vmul.f32 %v587, %v693
        %v704 = vld [vmem:[%s6] sm:$0xf]
        %v706 = vsel %vm593, %v704, 0
        %708 = vmatprep.subr.mxu0 %v482
        %709 = vmatpush1.msra.mxu0 %v480
        %710 = vmatprep.subr.mxu0 0.0
        %711 = vmatpush1.msra.mxu0 0.0
        %712 = vmatprep.subr.mxu0 0.0
        %713 = vmatpush1.msra.mxu0 0.0
        %714 = vmatprep.subr.mxu0 0.0
        %715 = vmatpush1.msra.mxu0 0.0
        %716 = vmatprep.subr.mxu0 0.0
        %717 = vmatpush1.msra.mxu0 0.0
        %718 = vmatprep.subr.mxu0 0.0
        %719 = vmatpush1.msra.mxu0 0.0
        %720 = vmatprep.subr.mxu0 0.0
        %721 = vmatpush1.msra.mxu0 0.0
        %722 = vmatprep.subr.mxu0 0.0
        %723 = vmatpush1.msra.mxu0 0.0
        %724 = vmatprep.subr.mxu0 0.0
        %725 = vmatpush1.msra.mxu0 0.0
        %726 = vmatprep.subr.mxu0 0.0
        %727 = vmatpush1.msra.mxu0 0.0
        %728 = vmatprep.subr.mxu0 0.0
        %729 = vmatpush1.msra.mxu0 0.0
        %730 = vmatprep.subr.mxu0 0.0
        %731 = vmatpush1.msra.mxu0 0.0
        %732 = vmatprep.subr.mxu0 0.0
        %733 = vmatpush1.msra.mxu0 0.0
        %734 = vmatprep.subr.mxu0 0.0
        %735 = vmatpush1.msra.mxu0 0.0
        %736 = vmatprep.subr.mxu0 0.0
        %737 = vmatpush1.msra.mxu0 0.0
        %738 = vmatprep.subr.mxu0 0.0
        %739 = vmatpush1.msra.mxu0 0.0
        %740 = vmatprep.subr.mxu0 0.0
        %741 = vmatpush1.msra.mxu0 0.0
        %742 = vmatprep.subr.mxu0 0.0
        %743 = vmatpush1.msra.mxu0 0.0
        %744 = vmatprep.subr.mxu0 0.0
        %745 = vmatpush1.msra.mxu0 0.0
        %746 = vmatprep.subr.mxu0 0.0
        %747 = vmatpush1.msra.mxu0 0.0
        %748 = vmatprep.subr.mxu0 0.0
        %749 = vmatpush1.msra.mxu0 0.0
        %750 = vmatprep.subr.mxu0 0.0
        %751 = vmatpush1.msra.mxu0 0.0
        %752 = vmatprep.subr.mxu0 0.0
        %753 = vmatpush1.msra.mxu0 0.0
        %754 = vmatprep.subr.mxu0 0.0
        %755 = vmatpush1.msra.mxu0 0.0
        %756 = vmatprep.subr.mxu0 0.0
        %757 = vmatpush1.msra.mxu0 0.0
        %758 = vmatprep.subr.mxu0 0.0
        %759 = vmatpush1.msra.mxu0 0.0
        %760 = vmatprep.subr.mxu0 0.0
        %761 = vmatpush1.msra.mxu0 0.0
        %762 = vmatprep.subr.mxu0 0.0
        %763 = vmatpush1.msra.mxu0 0.0
        %764 = vmatprep.subr.mxu0 0.0
        %765 = vmatpush1.msra.mxu0 0.0
        %766 = vmatprep.subr.mxu0 0.0
        %767 = vmatpush1.msra.mxu0 0.0
        %768 = vmatprep.subr.mxu0 0.0
        %769 = vmatpush1.msra.mxu0 0.0
        %770 = vmatprep.subr.mxu0 0.0
        %771 = vmatpush1.msra.mxu0 0.0
        %772 = vmatprep.mubr.f32.mxu0 0.0
        %773 = vmatmul.mubr.f32.gmra.mrb[0].mxu0 %v706
        %v774 = vpop.f32.mrb[0].mxu0
        %v775 = vadd.f32 0.0, %v774
        %v776 = vpop.f32.mrb[0].mxu0
        %v777 = vadd.f32 0.0, %v776
        %778 = vdwg.mxu0
        %v780 = vsel %vm374, %v695, 0
        %782 = vmatprep.subr.mxu0 %v697
        %783 = vmatpush1.msra.mxu0 %v696
        %784 = vmatprep.subr.mxu0 %v699
        %785 = vmatpush1.msra.mxu0 %v698
        %786 = vmatprep.subr.mxu0 %v701
        %787 = vmatpush1.msra.mxu0 %v700
        %788 = vmatprep.subr.mxu0 %v703
        %789 = vmatpush1.msra.mxu0 %v702
        %790 = vmatprep.subr.mxu0 0.0
        %791 = vmatpush1.msra.mxu0 0.0
        %792 = vmatprep.subr.mxu0 0.0
        %793 = vmatpush1.msra.mxu0 0.0
        %794 = vmatprep.subr.mxu0 0.0
        %795 = vmatpush1.msra.mxu0 0.0
        %796 = vmatprep.subr.mxu0 0.0
        %797 = vmatpush1.msra.mxu0 0.0
        %798 = vmatprep.subr.mxu0 0.0
        %799 = vmatpush1.msra.mxu0 0.0
        %800 = vmatprep.subr.mxu0 0.0
        %801 = vmatpush1.msra.mxu0 0.0
        %802 = vmatprep.subr.mxu0 0.0
        %803 = vmatpush1.msra.mxu0 0.0
        %804 = vmatprep.subr.mxu0 0.0
        %805 = vmatpush1.msra.mxu0 0.0
        %806 = vmatprep.subr.mxu0 0.0
        %807 = vmatpush1.msra.mxu0 0.0
        %808 = vmatprep.subr.mxu0 0.0
        %809 = vmatpush1.msra.mxu0 0.0
        %810 = vmatprep.subr.mxu0 0.0
        %811 = vmatpush1.msra.mxu0 0.0
        %812 = vmatprep.subr.mxu0 0.0
        %813 = vmatpush1.msra.mxu0 0.0
        %814 = vmatprep.subr.mxu0 0.0
        %815 = vmatpush1.msra.mxu0 0.0
        %816 = vmatprep.subr.mxu0 0.0
        %817 = vmatpush1.msra.mxu0 0.0
        %818 = vmatprep.subr.mxu0 0.0
        %819 = vmatpush1.msra.mxu0 0.0
        %820 = vmatprep.subr.mxu0 0.0
        %821 = vmatpush1.msra.mxu0 0.0
        %822 = vmatprep.subr.mxu0 0.0
        %823 = vmatpush1.msra.mxu0 0.0
        %824 = vmatprep.subr.mxu0 0.0
        %825 = vmatpush1.msra.mxu0 0.0
        %826 = vmatprep.subr.mxu0 0.0
        %827 = vmatpush1.msra.mxu0 0.0
        %828 = vmatprep.subr.mxu0 0.0
        %829 = vmatpush1.msra.mxu0 0.0
        %830 = vmatprep.subr.mxu0 0.0
        %831 = vmatpush1.msra.mxu0 0.0
        %832 = vmatprep.subr.mxu0 0.0
        %833 = vmatpush1.msra.mxu0 0.0
        %834 = vmatprep.subr.mxu0 0.0
        %835 = vmatpush1.msra.mxu0 0.0
        %836 = vmatprep.subr.mxu0 0.0
        %837 = vmatpush1.msra.mxu0 0.0
        %838 = vmatprep.subr.mxu0 0.0
        %839 = vmatpush1.msra.mxu0 0.0
        %840 = vmatprep.subr.mxu0 0.0
        %841 = vmatpush1.msra.mxu0 0.0
        %842 = vmatprep.subr.mxu0 0.0
        %843 = vmatpush1.msra.mxu0 0.0
        %844 = vmatprep.subr.mxu0 0.0
        %845 = vmatpush1.msra.mxu0 0.0
        %846 = vmatprep.mubr.f32.mxu0 0.0
        %847 = vmatmul.mubr.f32.gmra.mrb[0].mxu0 %v780
        %v848 = vpop.f32.mrb[0].mxu0
        %v849 = vadd.f32 %v775, %v848
        %v850 = vpop.f32.mrb[0].mxu0
        %v851 = vadd.f32 %v777, %v850
        %852 = vdwg.mxu0
        %v853 = vadd.f32 %v359, %v361
        %v854 = vrot.slane %v853, 4
        %v855 = vadd.f32 %v853, %v854
        %v856 = vrot.slane %v855, 2
        %v857 = vadd.f32 %v855, %v856
        %v858 = vrot.slane %v857, 1
        %v859 = vadd.f32 %v857, %v858
        %v860 = vadd.f32 %v360, %v362
        %v861 = vrot.slane %v860, 4
        %v862 = vadd.f32 %v860, %v861
        %v863 = vrot.slane %v862, 2
        %v864 = vadd.f32 %v862, %v863
        %v865 = vrot.slane %v864, 1
        %v866 = vadd.f32 %v864, %v865
        %v867 = vadd.f32 %v363, %v365
        %v868 = vrot.slane %v867, 4
        %v869 = vadd.f32 %v867, %v868
        %v870 = vrot.slane %v869, 2
        %v871 = vadd.f32 %v869, %v870
        %v872 = vrot.slane %v871, 1
        %v873 = vadd.f32 %v871, %v872
        %v874 = vadd.f32 %v364, %v366
        %v875 = vrot.slane %v874, 4
        %v876 = vadd.f32 %v874, %v875
        %v877 = vrot.slane %v876, 2
        %v878 = vadd.f32 %v876, %v877
        %v879 = vrot.slane %v878, 1
        %v880 = vadd.f32 %v878, %v879
        %v881 = vmul.f32 %v480, %v480
        %v882 = vmul.f32 %v482, %v482
        %v883 = vrot.slane %v881, 4
        %v884 = vadd.f32 %v881, %v883
        %v885 = vrot.slane %v884, 2
        %v886 = vadd.f32 %v884, %v885
        %v887 = vrot.slane %v886, 1
        %v888 = vadd.f32 %v886, %v887
        %v889 = vrot.slane %v882, 4
        %v890 = vadd.f32 %v882, %v889
        %v891 = vrot.slane %v890, 2
        %v892 = vadd.f32 %v890, %v891
        %v893 = vrot.slane %v892, 1
        %v894 = vadd.f32 %v892, %v893
        %v895 = vadd.f32 %v859, 1.0
        %v896 = vadd.f32 %v866, 1.0
        %v897 = vmul.f32 %v895, 0.007352941
        %v898 = vmul.f32 %v896, 0.007352941
        %v899 = vadd.f32 %v873, 1.0
        %v900 = vadd.f32 %v880, 1.0
        %v901 = vmul.f32 %v888, %v899
        %v902 = vmul.f32 %v894, %v900
        %v903 = vmul.f32 %v901, 0.007352941
        %v904 = vmul.f32 %v902, 0.007352941
        %v905 = vmul.f32 %v897, %v897
        %v906 = vmul.f32 %v898, %v898
        %v907 = vsub.f32 %v903, %v905
        %v908 = vsub.f32 %v904, %v906
        %v909 = vadd.f32 %v907, 1e-05
        %v910 = vadd.f32 %v908, 1e-05
        %v911 = vrsqrt.pop %v909
        %v912 = vrsqrt.pop %v910
        %v913 = vld [vmem:[%s7] sm:$0xf]
        %915 = vset.pattern.permute.xlu0 0
        %916 = vperm.xlu0 %915, %v913
        %v917 = vpop.permute.xlu0 %916
        %v919 = vmul.f32 %v897, %v917
        %v920 = vmul.f32 %v898, %v917
        %v921 = vsub.f32 %v849, %v919
        %v922 = vsub.f32 %v851, %v920
        %v923 = vmul.f32 %v921, %v911
        %v924 = vmul.f32 %v922, %v912
        %v925 = vld [vmem:[%s8] sm:$0xf]
        %927 = vset.pattern.permute.xlu0 0
        %928 = vperm.xlu0 %927, %v925
        %v929 = vpop.permute.xlu0 %928
        %v931 = vadd.f32 %v923, %v929
        %v932 = vadd.f32 %v924, %v929
        %v935 = vcombine.low %v931, %v932
        %937 = vst [vmem:[%s356] sm:$0xff] %v935
        %s938 = sand.u32 %s225, 1
        %s939 = scalar_lea.sflag [#allocation4], %s938
        %s940 = sand.u32 %s225, 1
        %s941 = smul.addr %s940, 8
        %s942 = scalar_lea.vmem [#allocation3], %s941
        // Predicated region
        $region80: #{pre_htsk_forward.1} parent=74 // pred_check
          %p943 = pneg %p235
        $region81: #{pre_htsk_forward.1} parent=74 // pred_check_branch
          %945 = sbr.rel (%p943) target = $region83
        $region82: #{pre_htsk_forward.1} parent=74 // pred_region
          %s946 = smul.u32 2, %s23
          %s948 = ssub.s32 128, 128
          %949 = vsyncadd %s939, %s948
          %s950 = smul.addr %s946, 64
          %s951 = scalar_lea.hbm %s9, %s950
          %s953 = sshll.u32 %s942, 4
          %s954 = int_to_ptr.vmem [resolvable:$true] %s953
          %956 = dma.vmem_to_hbm [thread:$0]  %s954, 128, %s951, %s939
        $region83: #{pre_htsk_forward.1} parent=74 // pred_fallthru
          _
      $region75: #{pre_htsk_forward.1} parent=5 // pred_fallthru
        _
      %p957 = scmp.le.s32.totalorder 2, %s18
      // Predicated region
      $region84: #{pre_htsk_forward.1} parent=5 // pred_check
        %p958 = pneg %p957
      $region85: #{pre_htsk_forward.1} parent=5 // pred_check_branch
        %960 = sbr.rel (%p958) target = $region87
      $region86: #{pre_htsk_forward.1} parent=5 // pred_region
        %s961 = ssub.s32 %s18, 2
        // Predicated region
        $region88: #{pre_htsk_forward.1} parent=86 // pred_check
          %p962 = pneg %p241
        $region89: #{pre_htsk_forward.1} parent=86 // pred_check_branch
          %964 = sbr.rel (%p962) target = $region91
        $region90: #{pre_htsk_forward.1} parent=86 // pred_region
          %s965 = sand.u32 %s226, 1
          %s966 = scalar_lea.sflag [#allocation4], %s965
          %s967 = sand.u32 %s226, 1
          %s968 = smul.addr %s967, 8
          %s969 = scalar_lea.vmem [#allocation3], %s968
          %970 = dma.done %s966, 128
        $region91: #{pre_htsk_forward.1} parent=86 // pred_fallthru
          _
      $region87: #{pre_htsk_forward.1} parent=5 // pred_fallthru
        _
    $region6: #{pre_htsk_forward.1} parent=1 // loop_footer
      %s22 = sadd.s32 1, %s18
    $region7: #{pre_htsk_forward.1} parent=1 // loop_footer_branch
      %17 = sbr.rel target = $region3
    $region8: #{pre_htsk_forward.1} parent=1 // loop_exit
      _
    %971 = vsyncpa [#allocation4], 1
    %s972 = scalar_lea.sflag [#allocation4], 1
    %973 = vsyncpa %s972, 1

</llo_original>
